<compile_context>
chip_gen: v7x
topology: tpu7x:2x2x1
jax: 0.10.0
libtpu: 0.0.40
codegen_flags: <defaults>
</compile_context>

<pallas_src>
import jax
import jax.numpy as jnp
from jax import lax
from jax.experimental import pallas as pl
from jax.experimental.pallas import tpu as pltpu
import numpy as np

# ---- static module config (mirrors MultiSampleDropout.__init__) ------------
MAX_DROPOUT_RATE = 0.3
NUM_SAMPLES = 4
DROPOUT_RATES = tuple(float(p) for p in np.linspace(0.0, MAX_DROPOUT_RATE, NUM_SAMPLES))

# split rates into identity (p == 0) samples and the ones that need a mask
_NONZERO_RATES = tuple(p for p in DROPOUT_RATES if p > 0.0)
_NUM_ZERO_RATE = NUM_SAMPLES - len(_NONZERO_RATES)
# bit-field width per non-zero sample carved out of one 32-bit hash
# (default config: 3 non-zero samples -> 10 bits each, plenty of resolution)
_FIELD_BITS = min(16, 32 // max(1, len(_NONZERO_RATES)))
_FIELD_MASK = (1 << _FIELD_BITS) - 1


def _hash_u32(x):
    """lowbias32 integer hash: uint32 -> well-mixed uint32 (platform independent)."""
    x = x ^ (x >> 16)
    x = x * jnp.uint32(0x7FEB352D)
    x = x ^ (x >> 15)
    x = x * jnp.uint32(0x846CA68B)
    x = x ^ (x >> 16)
    return x


def _msd_kernel(seed_ref, x_ref, w_ref, b_ref, o_ref):
    # classifier: (TM, H) x (C, H) contracted on H -> (TM, C) on the MXU,
    # f32 accumulation.  No transposed copy of W is ever materialized.
    logits = lax.dot_general(
        x_ref[...], w_ref[...],
        dimension_numbers=(((1,), (1,)), ((), ())),
        preferred_element_type=jnp.float32,
    ) + b_ref[...]

    tm, c = o_ref.shape

    # Global element coordinates: unique across batch tiles, so dropout masks
    # are NOT repeated between grid steps (per-tile "seeding" for free).
    row = lax.broadcasted_iota(jnp.int32, (tm, c), 0) + pl.program_id(0) * tm
    col = lax.broadcasted_iota(jnp.int32, (tm, c), 1)
    elem = (row * jnp.int32(c) + col).astype(jnp.uint32)
    seed_u = seed_ref[0].astype(jnp.uint32)

    # Single hash per element; each non-zero-rate sample reads its keep bit
    # from its own _FIELD_BITS-wide field of the hash.
    h = _hash_u32(elem + seed_u * jnp.uint32(0x9E3779B9))

    # Multi-sample dropout factored to a single per-element scale, with the
    # 1/NUM_SAMPLES averaging folded in:
    #   scale = sum_i keep_i / ((1 - p_i) * NUM_SAMPLES)
    #   out   = logits * scale
    scale = jnp.full((tm, c), jnp.float32(_NUM_ZERO_RATE / NUM_SAMPLES), jnp.float32)
    for j, p in enumerate(_NONZERO_RATES):      # static unroll, K is tiny
        field = (h >> jnp.uint32(j * _FIELD_BITS)) & jnp.uint32(_FIELD_MASK)
        # pure-integer keep test: keep with probability (1 - p)
        thr = jnp.uint32(int(round(p * float(1 << _FIELD_BITS))))
        keep = field >= thr
        w_keep = jnp.float32(1.0 / ((1.0 - p) * NUM_SAMPLES))
        scale = scale + jnp.where(keep, w_keep, jnp.float32(0.0))

    o_ref[...] = (logits * scale).astype(o_ref.dtype)


def _pick_batch_tile(B, H, C):
    """Largest batch tile (multiple of 8) whose double-buffered (TM,H) input and
    (TM,C) output tiles plus the VMEM-resident weight/bias stay well inside the
    default scoped-VMEM limit (also safe on v7x's 64 MiB VMEM)."""
    if B <= 8:
        return B
    budget = 24 * 1024 * 1024                    # bytes of VMEM we allow ourselves
    fixed = (C * H + C) * 4                      # resident weight + bias (f32)
    per_row = (H + C) * 4 * 2                    # double-buffered in + out tiles, per row
    tm_cap = max(8, (budget - fixed) // per_row)
    tm = min(B, 1024, int(tm_cap))
    return max(8, (tm // 8) * 8)


@jax.jit
def multi_sample_dropout(x, w, b, seed):
    """x: (B, H) f32, w: (C, H) f32 (torch Linear layout), b: (C,) f32,
    seed: (1,) int32 controlling the dropout masks."""
    B, H = x.shape
    C = w.shape[0]
    b2 = b.reshape(1, C)
    tm = _pick_batch_tile(B, H, C)

    # TODO(synk): for large production C, pad C to a multiple of 128 (lane-dense
    # output slab) and consider bf16 x/W inputs on v6e/v7x; left in f32 here
    # since the (B, C) writeback is tiny next to the (B, H) input traffic.
    grid_spec = pltpu.PrefetchScalarGridSpec(
        num_scalar_prefetch=1,                 # seed lives in SMEM
        grid=(pl.cdiv(B, tm),),
        in_specs=[
            pl.BlockSpec((tm, H), lambda i, seed_ref: (i, 0)),   # batch tile (pipelined)
            pl.BlockSpec((C, H), lambda i, seed_ref: (0, 0)),    # weight, VMEM-resident
            pl.BlockSpec((1, C), lambda i, seed_ref: (0, 0)),    # bias,   VMEM-resident
        ],
        out_specs=pl.BlockSpec((tm, C), lambda i, seed_ref: (i, 0)),
    )

    return pl.pallas_call(
        _msd_kernel,
        out_shape=jax.ShapeDtypeStruct((B, C), jnp.float32),
        grid_spec=grid_spec,
        compiler_params=pltpu.CompilerParams(
            # batch tiles are independent -> lets the two v7x TensorCores split them
            dimension_semantics=("parallel",),
        ),
    )(seed, x, w, b2)


if __name__ == "__main__":
    # small shapes implied by the forward: classifier input (B, H) -> (B, C)
    B, H, C = 8, 32, 8

    key = jax.random.PRNGKey(0)
    kx, kw, kb = jax.random.split(key, 3)
    x = jax.random.normal(kx, (B, H), dtype=jnp.float32)
    w = jax.random.normal(kw, (C, H), dtype=jnp.float32) * 0.1   # Linear weight (out, in)
    b = jax.random.normal(kb, (C,), dtype=jnp.float32) * 0.01    # Linear bias
    seed = jnp.array([0], dtype=jnp.int32)

    out = multi_sample_dropout(x, w, b, seed)
    jax.block_until_ready(out)

    assert out.shape == (B, C) and out.dtype == jnp.float32
    assert bool(jnp.all(jnp.isfinite(out)))

    # sanity: the per-element scale is bounded by [0, mean_i 1/(1-p_i)], so the
    # kernel output magnitude can never exceed that multiple of |logits|+|b|.
    logits_ref = x @ w.T + b
    max_scale = float(np.mean([1.0 / (1.0 - p) for p in DROPOUT_RATES]))
    assert bool(jnp.all(jnp.abs(out) <= jnp.abs(logits_ref) * max_scale + 1e-4))

    print("KERNEL_OK")
</pallas_src>

<mosaic_0001>
module attributes {stable_mosaic.version = 11 : i64} {
  func.func @_msd_kernel(%arg0: i32, %arg1: memref<1xi32, #tpu.memory_space<smem>>, %arg2: memref<8x32xf32, #tpu.memory_space<vmem>>, %arg3: memref<8x32xf32, #tpu.memory_space<vmem>>, %arg4: memref<1x8xf32, #tpu.memory_space<vmem>>, %arg5: memref<8x8xf32, #tpu.memory_space<vmem>>) attributes {dimension_semantics = [#tpu.dimension_semantics<parallel>], iteration_bounds = array<i64: 1>, scalar_prefetch = 1 : i64, scratch_operands = 0 : i64, tpu.core_type = #tpu.core_type<tc>, window_params = [{transform_indices = @transform_0, window_bounds = array<i64: 8, 32>}, {pipeline_mode = #tpu.pipeline_mode<synchronous>, transform_indices = @transform_1, window_bounds = array<i64: 8, 32>}, {pipeline_mode = #tpu.pipeline_mode<synchronous>, transform_indices = @transform_2, window_bounds = array<i64: 1, 8>}, {transform_indices = @transform_3, window_bounds = array<i64: 8, 8>}]} {
    %c0 = arith.constant 0 : index
    %c0_0 = arith.constant 0 : index
    %0 = vector.load %arg2[%c0, %c0_0] : memref<8x32xf32, #tpu.memory_space<vmem>>, vector<8x32xf32>
    %c0_1 = arith.constant 0 : index
    %c0_2 = arith.constant 0 : index
    %1 = vector.load %arg3[%c0_1, %c0_2] : memref<8x32xf32, #tpu.memory_space<vmem>>, vector<8x32xf32>
    %cst = arith.constant dense<0.000000e+00> : vector<8x8xf32>
    %2 = tpu.matmul %0, %1, %cst {dimension_numbers = #tpu.dot_dimension_numbers<[1], [1], [0], [0], [0, 0, 1, 0], [], []>} : vector<8x32xf32>, vector<8x32xf32>, vector<8x8xf32> -> vector<8x8xf32>
    %c0_3 = arith.constant 0 : index
    %c0_4 = arith.constant 0 : index
    %3 = vector.load %arg4[%c0_3, %c0_4] : memref<1x8xf32, #tpu.memory_space<vmem>>, vector<1x8xf32>
    %4 = vector.broadcast %3 : vector<1x8xf32> to vector<8x8xf32>
    %5 = arith.addf %2, %4 : vector<8x8xf32>
    %6 = tpu.iota {dimensions = array<i32: 0>} : vector<8x8xi32>
    %c8_i32 = arith.constant 8 : i32
    %7 = arith.muli %arg0, %c8_i32 : i32
    %8 = vector.broadcast %7 : i32 to vector<8x8xi32>
    %9 = arith.addi %6, %8 : vector<8x8xi32>
    %10 = tpu.iota {dimensions = array<i32: 1>} : vector<8x8xi32>
    %c8_i32_5 = arith.constant 8 : i32
    %11 = vector.broadcast %c8_i32_5 : i32 to vector<8x8xi32>
    %12 = arith.muli %9, %11 : vector<8x8xi32>
    %13 = arith.addi %12, %10 : vector<8x8xi32>
    %c0_6 = arith.constant 0 : index
    %14 = memref.load %arg1[%c0_6] : memref<1xi32, #tpu.memory_space<smem>>
    %c-1640531527_i32 = arith.constant -1640531527 : i32
    %15 = arith.muli %14, %c-1640531527_i32 : i32
    %16 = vector.broadcast %15 : i32 to vector<8x8xi32>
    %17 = arith.addi %13, %16 : vector<8x8xi32>
    %c16_i32 = arith.constant 16 : i32
    %18 = vector.broadcast %c16_i32 : i32 to vector<8x8xi32>
    %19 = arith.shrui %17, %18 : vector<8x8xi32>
    %20 = arith.xori %17, %19 : vector<8x8xi32>
    %c2146121005_i32 = arith.constant 2146121005 : i32
    %21 = vector.broadcast %c2146121005_i32 : i32 to vector<8x8xi32>
    %22 = arith.muli %20, %21 : vector<8x8xi32>
    %c15_i32 = arith.constant 15 : i32
    %23 = vector.broadcast %c15_i32 : i32 to vector<8x8xi32>
    %24 = arith.shrui %22, %23 : vector<8x8xi32>
    %25 = arith.xori %22, %24 : vector<8x8xi32>
    %c-2073254261_i32 = arith.constant -2073254261 : i32
    %26 = vector.broadcast %c-2073254261_i32 : i32 to vector<8x8xi32>
    %27 = arith.muli %25, %26 : vector<8x8xi32>
    %c16_i32_7 = arith.constant 16 : i32
    %28 = vector.broadcast %c16_i32_7 : i32 to vector<8x8xi32>
    %29 = arith.shrui %27, %28 : vector<8x8xi32>
    %30 = arith.xori %27, %29 : vector<8x8xi32>
    %cst_8 = arith.constant 2.500000e-01 : f32
    %31 = vector.broadcast %cst_8 : f32 to vector<8x8xf32>
    %c0_i32 = arith.constant 0 : i32
    %32 = vector.broadcast %c0_i32 : i32 to vector<8x8xi32>
    %33 = arith.shrui %30, %32 : vector<8x8xi32>
    %c1023_i32 = arith.constant 1023 : i32
    %34 = vector.broadcast %c1023_i32 : i32 to vector<8x8xi32>
    %35 = arith.andi %33, %34 : vector<8x8xi32>
    %c102_i32 = arith.constant 102 : i32
    %36 = vector.broadcast %c102_i32 : i32 to vector<8x8xi32>
    %37 = arith.cmpi uge, %35, %36 : vector<8x8xi32>
    %cst_9 = arith.constant 0.277777791 : f32
    %cst_10 = arith.constant 0.000000e+00 : f32
    %38 = vector.broadcast %cst_9 : f32 to vector<8x8xf32>
    %39 = vector.broadcast %cst_10 : f32 to vector<8x8xf32>
    %40 = arith.select %37, %38, %39 : vector<8x8xi1>, vector<8x8xf32>
    %41 = arith.addf %31, %40 : vector<8x8xf32>
    %c10_i32 = arith.constant 10 : i32
    %42 = vector.broadcast %c10_i32 : i32 to vector<8x8xi32>
    %43 = arith.shrui %30, %42 : vector<8x8xi32>
    %c1023_i32_11 = arith.constant 1023 : i32
    %44 = vector.broadcast %c1023_i32_11 : i32 to vector<8x8xi32>
    %45 = arith.andi %43, %44 : vector<8x8xi32>
    %c205_i32 = arith.constant 205 : i32
    %46 = vector.broadcast %c205_i32 : i32 to vector<8x8xi32>
    %47 = arith.cmpi uge, %45, %46 : vector<8x8xi32>
    %cst_12 = arith.constant 3.125000e-01 : f32
    %cst_13 = arith.constant 0.000000e+00 : f32
    %48 = vector.broadcast %cst_12 : f32 to vector<8x8xf32>
    %49 = vector.broadcast %cst_13 : f32 to vector<8x8xf32>
    %50 = arith.select %47, %48, %49 : vector<8x8xi1>, vector<8x8xf32>
    %51 = arith.addf %41, %50 : vector<8x8xf32>
    %c20_i32 = arith.constant 20 : i32
    %52 = vector.broadcast %c20_i32 : i32 to vector<8x8xi32>
    %53 = arith.shrui %30, %52 : vector<8x8xi32>
    %c1023_i32_14 = arith.constant 1023 : i32
    %54 = vector.broadcast %c1023_i32_14 : i32 to vector<8x8xi32>
    %55 = arith.andi %53, %54 : vector<8x8xi32>
    %c307_i32 = arith.constant 307 : i32
    %56 = vector.broadcast %c307_i32 : i32 to vector<8x8xi32>
    %57 = arith.cmpi uge, %55, %56 : vector<8x8xi32>
    %cst_15 = arith.constant 0.357142866 : f32
    %cst_16 = arith.constant 0.000000e+00 : f32
    %58 = vector.broadcast %cst_15 : f32 to vector<8x8xf32>
    %59 = vector.broadcast %cst_16 : f32 to vector<8x8xf32>
    %60 = arith.select %57, %58, %59 : vector<8x8xi1>, vector<8x8xf32>
    %61 = arith.addf %51, %60 : vector<8x8xf32>
    %62 = arith.mulf %5, %61 : vector<8x8xf32>
    %c0_17 = arith.constant 0 : index
    %c0_18 = arith.constant 0 : index
    %63 = vector.load %arg5[%c0_17, %c0_18] : memref<8x8xf32, #tpu.memory_space<vmem>>, vector<8x8xf32>
    tpu.vector_store %arg5[%c0_17, %c0_18], %62 {strides = array<i32>} : memref<8x8xf32, #tpu.memory_space<vmem>>, vector<8x8xf32>,
    return
  }
  func.func @transform_0(%arg0: i32, %arg1: memref<1xi32, #tpu.memory_space<smem>>) -> (i32, i32) {
    %c0_i32 = arith.constant 0 : i32
    %c0_i32_0 = arith.constant 0 : i32
    return %arg0, %c0_i32 : i32, i32
  }
  func.func @transform_1(%arg0: i32, %arg1: memref<1xi32, #tpu.memory_space<smem>>) -> (i32, i32) {
    %c0_i32 = arith.constant 0 : i32
    %c0_i32_0 = arith.constant 0 : i32
    %c0_i32_1 = arith.constant 0 : i32
    return %c0_i32, %c0_i32_0 : i32, i32
  }
  func.func @transform_2(%arg0: i32, %arg1: memref<1xi32, #tpu.memory_space<smem>>) -> (i32, i32) {
    %c0_i32 = arith.constant 0 : i32
    %c0_i32_0 = arith.constant 0 : i32
    %c0_i32_1 = arith.constant 0 : i32
    return %c0_i32, %c0_i32_0 : i32, i32
  }
  func.func @transform_3(%arg0: i32, %arg1: memref<1xi32, #tpu.memory_space<smem>>) -> (i32, i32) {
    %c0_i32 = arith.constant 0 : i32
    %c0_i32_0 = arith.constant 0 : i32
    return %arg0, %c0_i32 : i32, i32
  }
}

</mosaic_0001>

<llo_original>
// kernel: multi_sample_dropout.1
$region0: #{multi_sample_dropout.1}
  #allocation0 [shape = 'u32[]', space=smem, size = 0x4, offset = 0x4, fixed_abs, tag = 'smem constant byte address 0x4 - core index']
  #allocation1 [shape = 'u32[144,128]{1,0:T(1,128)}', space=vmem, size = 0x12000, scoped, tag = 'internal scratch']
  #allocation2 [shape = 's32[1]{0}', space=sflag, size = 0x4, scoped, tag = 'scoped memory for multi_sample_dropout.1']
  #allocation3 [shape = 's32[1]{0:T(128)S(6)}', space=smem, size = 0x200, scoped, tag = 'prefetched SMEM operand 0']
  %s0 = inlined_call_operand.<no memory space> [shape: s32[1], index: 0, kind: input, shape index: {}]
  %s1 = inlined_call_operand.hbm [shape: f32[8,32], index: 1, kind: input, shape index: {}]
  %s2 = inlined_call_operand.vmem [shape: f32[8,32], index: 2, kind: input, shape index: {}]
  %s3 = inlined_call_operand.vmem [shape: f32[1,8], index: 3, kind: input, shape index: {}]
  %s4 = inlined_call_operand.hbm [shape: f32[8,8], index: 4, kind: output, shape index: {}]
  %s5 = sld [smem:[#allocation0]]
  $region26: #{multi_sample_dropout.1} parent=0
    _
  %s7 = ssub.s32 1, %s5
  %s8 = scalar_select 0, %s7, %s5
  %9 = sst [smem:[#allocation3]] %s0
  $region1: #{multi_sample_dropout.1} parent=0
    #allocation4 [shape = 'u8[4096]{0}', space=vmem, size = 0x1000, scoped, tag = 'input window, operand 1, single buffered']
    #allocation5 [shape = 's32[1]{0}', space=sflag, size = 0x4, scoped, tag = 'scoped memory for multi_sample_dropout.1']
    #allocation6 [shape = 's32[1]{0}', space=sflag, size = 0x4, scoped, tag = 'scoped memory for multi_sample_dropout.1']
    #allocation7 [shape = 'u8[4096]{0}', space=vmem, size = 0x1000, scoped, tag = 'output window, operand 0, single buffered']
    %10 = vsyncpa [#allocation5], 0
    %11 = vsyncpa [#allocation6], 0
    // Predicated region
    $region2: #{multi_sample_dropout.1} parent=1 // pred_check
      _
    $region3: #{multi_sample_dropout.1} parent=1 // pred_check_branch
      %13 = sbr.rel (0) target = $region5
    $region4: #{multi_sample_dropout.1} parent=1 // pred_region
      %s15 = ssub.s32 128, 128
      %16 = vsyncadd [#allocation5], %s15
      %s18 = sshll.u32 [#allocation4], 4
      %s19 = int_to_ptr.vmem [resolvable:$true] %s18
      %21 = dma.hbm_to_vmem [thread:$0]  %s1, 128, %s19, [#allocation5]
    $region5: #{multi_sample_dropout.1} parent=1 // pred_fallthru
      _
    // Predicated region
    $region6: #{multi_sample_dropout.1} parent=1 // pred_check
      _
    $region7: #{multi_sample_dropout.1} parent=1 // pred_check_branch
      %23 = sbr.rel (0) target = $region9
    $region8: #{multi_sample_dropout.1} parent=1 // pred_region
      _
    $region9: #{multi_sample_dropout.1} parent=1 // pred_fallthru
      _
    // Predicated region
    $region10: #{multi_sample_dropout.1} parent=1 // pred_check
      _
    $region11: #{multi_sample_dropout.1} parent=1 // pred_check_branch
      %25 = sbr.rel (0) target = $region13
    $region12: #{multi_sample_dropout.1} parent=1 // pred_region
      _
    $region13: #{multi_sample_dropout.1} parent=1 // pred_fallthru
      _
    // Predicated region
    $region14: #{multi_sample_dropout.1} parent=1 // pred_check
      _
    $region15: #{multi_sample_dropout.1} parent=1 // pred_check_branch
      %27 = sbr.rel (0) target = $region17
    $region16: #{multi_sample_dropout.1} parent=1 // pred_region
      %28 = dma.done [#allocation5], 128
    $region17: #{multi_sample_dropout.1} parent=1 // pred_fallthru
      _
    %v29 = vld [vmem:[#allocation4] sm:$0xff]
    %v30 = vld [vmem:[%s2] sm:$0xff]
    %v31 = vld [vmem:[%s3] sm:$0x1]
    %v33 = vlaneseq
    %v34 = vshrl.u32 %v33, 7
    %v35 = vsub.s32 0, %v34
    %v36 = vrot.slane %v31, %v35
    %vm38 = vcmask 261120
    %v40 = vsel %vm38, %v29, 0
    %v43 = vsel %vm38, %v30, 0
    %45 = vmatprep.subr.mxu0 0.0
    %46 = vmatpush1.xpose.msra.mxu0 %v43
    %47 = vmatprep.subr.mxu0 0.0
    %48 = vmatpush1.xpose.msra.mxu0 0.0
    %49 = vmatprep.subr.mxu0 0.0
    %50 = vmatpush1.xpose.msra.mxu0 0.0
    %51 = vmatprep.subr.mxu0 0.0
    %52 = vmatpush1.xpose.msra.mxu0 0.0
    %53 = vmatprep.subr.mxu0 0.0
    %54 = vmatpush1.xpose.msra.mxu0 0.0
    %55 = vmatprep.subr.mxu0 0.0
    %56 = vmatpush1.xpose.msra.mxu0 0.0
    %57 = vmatprep.subr.mxu0 0.0
    %58 = vmatpush1.xpose.msra.mxu0 0.0
    %59 = vmatprep.subr.mxu0 0.0
    %60 = vmatpush1.xpose.msra.mxu0 0.0
    %61 = vmatprep.subr.mxu0 0.0
    %62 = vmatpush1.xpose.msra.mxu0 0.0
    %63 = vmatprep.subr.mxu0 0.0
    %64 = vmatpush1.xpose.msra.mxu0 0.0
    %65 = vmatprep.subr.mxu0 0.0
    %66 = vmatpush1.xpose.msra.mxu0 0.0
    %67 = vmatprep.subr.mxu0 0.0
    %68 = vmatpush1.xpose.msra.mxu0 0.0
    %69 = vmatprep.subr.mxu0 0.0
    %70 = vmatpush1.xpose.msra.mxu0 0.0
    %71 = vmatprep.subr.mxu0 0.0
    %72 = vmatpush1.xpose.msra.mxu0 0.0
    %73 = vmatprep.subr.mxu0 0.0
    %74 = vmatpush1.xpose.msra.mxu0 0.0
    %75 = vmatprep.subr.mxu0 0.0
    %76 = vmatpush1.xpose.msra.mxu0 0.0
    %77 = vmatprep.subr.mxu0 0.0
    %78 = vmatpush1.xpose.msra.mxu0 0.0
    %79 = vmatprep.subr.mxu0 0.0
    %80 = vmatpush1.xpose.msra.mxu0 0.0
    %81 = vmatprep.subr.mxu0 0.0
    %82 = vmatpush1.xpose.msra.mxu0 0.0
    %83 = vmatprep.subr.mxu0 0.0
    %84 = vmatpush1.xpose.msra.mxu0 0.0
    %85 = vmatprep.subr.mxu0 0.0
    %86 = vmatpush1.xpose.msra.mxu0 0.0
    %87 = vmatprep.subr.mxu0 0.0
    %88 = vmatpush1.xpose.msra.mxu0 0.0
    %89 = vmatprep.subr.mxu0 0.0
    %90 = vmatpush1.xpose.msra.mxu0 0.0
    %91 = vmatprep.subr.mxu0 0.0
    %92 = vmatpush1.xpose.msra.mxu0 0.0
    %93 = vmatprep.subr.mxu0 0.0
    %94 = vmatpush1.xpose.msra.mxu0 0.0
    %95 = vmatprep.subr.mxu0 0.0
    %96 = vmatpush1.xpose.msra.mxu0 0.0
    %97 = vmatprep.subr.mxu0 0.0
    %98 = vmatpush1.xpose.msra.mxu0 0.0
    %99 = vmatprep.subr.mxu0 0.0
    %100 = vmatpush1.xpose.msra.mxu0 0.0
    %101 = vmatprep.subr.mxu0 0.0
    %102 = vmatpush1.xpose.msra.mxu0 0.0
    %103 = vmatprep.subr.mxu0 0.0
    %104 = vmatpush1.xpose.msra.mxu0 0.0
    %105 = vmatprep.subr.mxu0 0.0
    %106 = vmatpush1.xpose.msra.mxu0 0.0
    %107 = vmatprep.subr.mxu0 0.0
    %108 = vmatpush1.xpose.msra.mxu0 0.0
    %109 = vmatprep.mubr.f32.mxu0 0.0
    %110 = vmatmul.mubr.f32.gmra.mrb[0].mxu0 %v40
    %v111 = vpop.f32.mrb[0].mxu0
    %v112 = vadd.f32 %v36, %v111
    %v113 = vpop.f32.mrb[0].mxu0
    %114 = vdwg.mxu0
    %v115 = vlaneseq
    %v116 = vshrl.u32 %v115, 7
    %s117 = smul.u32 0, 8
    %v118 = vstv %s117
    %v119 = vadd.s32 %v116, %v118
    %v120 = vlaneseq
    %v121 = vand.u32 %v120, 127
    %v122 = vmul.u32 %v119, 8
    %v123 = vadd.s32 %v122, %v121
    %s124 = sld [smem:[#allocation3]]
    %s125 = smul.u32 %s124, 2654435769
    %v126 = vstv %s125
    %v127 = vadd.s32 %v123, %v126
    %v128 = vshrl.u32 %v127, 16
    %v129 = vxor.u32 %v127, %v128
    %v130 = vmul.u32 %v129, 2146121005
    %v131 = vshrl.u32 %v130, 15
    %v132 = vxor.u32 %v130, %v131
    %v133 = vmul.u32 %v132, 2221713035
    %v134 = vshrl.u32 %v133, 16
    %v135 = vxor.u32 %v133, %v134
    %v136 = vand.u32 %v135, 1023
    %vm137 = vcmp.ge.u32.totalorder %v136, 102
    %v138 = vsel %vm137, 0.2777778, 0.0
    %v139 = vadd.f32 %v138, 0.25
    %v140 = vshrl.u32 %v135, 10
    %v141 = vand.u32 %v140, 1023
    %vm142 = vcmp.ge.u32.totalorder %v141, 205
    %v143 = vsel %vm142, 0.3125, 0.0
    %v144 = vadd.f32 %v139, %v143
    %v145 = vshrl.u32 %v135, 20
    %v146 = vand.u32 %v145, 1023
    %vm147 = vcmp.ge.u32.totalorder %v146, 307
    %v148 = vsel %vm147, 0.35714287, 0.0
    %v149 = vadd.f32 %v144, %v148
    %v150 = vmul.f32 %v112, %v149
    %vm151 = vcmask 64512
    %152 = vst.msk [vmem:[#allocation7] sm:$0xff] %vm151, %v150
    // Predicated region
    $region18: #{multi_sample_dropout.1} parent=1 // pred_check
      _
    $region19: #{multi_sample_dropout.1} parent=1 // pred_check_branch
      %154 = sbr.rel (0) target = $region21
    $region20: #{multi_sample_dropout.1} parent=1 // pred_region
      %s156 = ssub.s32 128, 128
      %157 = vsyncadd [#allocation6], %s156
      %s159 = sshll.u32 [#allocation7], 4
      %s160 = int_to_ptr.vmem [resolvable:$true] %s159
      %162 = dma.vmem_to_hbm [thread:$0]  %s160, 128, %s4, [#allocation6]
    $region21: #{multi_sample_dropout.1} parent=1 // pred_fallthru
      _
    // Predicated region
    $region22: #{multi_sample_dropout.1} parent=1 // pred_check
      _
    $region23: #{multi_sample_dropout.1} parent=1 // pred_check_branch
      %164 = sbr.rel (0) target = $region25
    $region24: #{multi_sample_dropout.1} parent=1 // pred_region
      %165 = dma.done [#allocation6], 128
    $region25: #{multi_sample_dropout.1} parent=1 // pred_fallthru
      _
    %166 = vsyncpa [#allocation5], 1
    %167 = vsyncpa [#allocation6], 1

</llo_original>
